<compile_context>
chip_gen: v7x
topology: tpu7x:2x2x1
jax: 0.10.0
libtpu: 0.0.40
codegen_flags: <defaults>
</compile_context>

<pallas_src>
import functools

import jax
import jax.numpy as jnp
from jax import lax
from jax.experimental import pallas as pl
from jax.experimental.pallas import tpu as pltpu

_VMEM_LIMIT_BYTES = 32 * 1024 * 1024  # safe on v5e/v6e/v7x, far above per-step footprint


def _round_up(x, m):
    return (x + m - 1) // m * m


def _pad2(a, rows, cols, dtype):
    """Zero-pad a 2-D array to (rows, cols) in `dtype`; no-op copy path if aligned."""
    r, c = a.shape
    if (r, c) == (rows, cols):
        return a.astype(dtype)
    out = jnp.zeros((rows, cols), dtype)
    return out.at[:r, :c].set(a.astype(dtype))


# -------------------- small-N fully fused kernel (single launch) --------------------
def _fused_small_kernel(x_ref, adj_ref, w_gc1_ref, w_nw_ref, b_nw_ref,
                        adj_rec_ref, node_ref, nb_ref, *, compute_dtype, h1_pad):
    cdt = compute_dtype
    sup = jnp.dot(x_ref[...].astype(cdt), w_gc1_ref[...].astype(cdt),
                  preferred_element_type=jnp.float32)
    h1v = jnp.maximum(
        jnp.dot(adj_ref[...].astype(cdt), sup.astype(cdt),
                preferred_element_type=jnp.float32), 0.0)
    emb = (jnp.dot(h1v.astype(cdt), w_nw_ref[...].astype(cdt),
                   preferred_element_type=jnp.float32)
           + b_nw_ref[...])
    node = emb[:, :h1_pad]
    nb = emb[:, h1_pad:]
    node_ref[...] = node
    nb_ref[...] = nb
    # Contract on the last dim of BOTH operands -> no materialized transpose.
    adj_rec_ref[...] = lax.dot_general(
        node.astype(cdt), nb.astype(cdt),
        dimension_numbers=(((1,), (1,)), ((), ())),
        preferred_element_type=jnp.float32)


# -------------------- pass 2 (tiled): fused support + H1 + both Linears --------------------
# acc += adj[i,k] @ (x[k] @ W_gc1);  at k==last: H1 = relu(acc);
# [node|nb] = H1 @ [W_node|W_nb] + [b_node|b_nb]  (one 2*h1_pad-wide MXU pass).
def _embed_kernel(adj_ref, x_ref, w_gc1_ref, w_nw_ref, b_nw_ref,
                  node_ref, nb_ref, acc_ref, *, compute_dtype, h1_pad):
    cdt = compute_dtype
    k = pl.program_id(1)

    @pl.when(k == 0)
    def _():
        acc_ref[...] = jnp.zeros_like(acc_ref)

    sup = jnp.dot(x_ref[...].astype(cdt), w_gc1_ref[...].astype(cdt),
                  preferred_element_type=jnp.float32)
    acc_ref[...] += jnp.dot(adj_ref[...].astype(cdt), sup.astype(cdt),
                            preferred_element_type=jnp.float32)

    @pl.when(k == pl.num_programs(1) - 1)
    def _():
        h1v = jnp.maximum(acc_ref[...], 0.0)
        emb = (jnp.dot(h1v.astype(cdt), w_nw_ref[...].astype(cdt),
                       preferred_element_type=jnp.float32)
               + b_nw_ref[...])
        node_ref[...] = emb[:, :h1_pad]
        nb_ref[...] = emb[:, h1_pad:]


# -------------------- pass 3 (tiled): adj_rec = node @ nb^T --------------------
def _adj_rec_kernel(node_ref, nb_ref, out_ref, *, compute_dtype):
    cdt = compute_dtype
    out_ref[...] = lax.dot_general(
        node_ref[...].astype(cdt), nb_ref[...].astype(cdt),
        dimension_numbers=(((1,), (1,)), ((), ())),
        preferred_element_type=jnp.float32)


def gcn_modified_ae2_forward(x, adj_norm, params, *, tile=None, use_bf16=True,
                             small_n_threshold=768, force_tiled=False):
    """Pallas forward of GCNModifiedAE2.

    x:        [N, F_in] float32
    adj_norm: [N, N]    float32
    Returns (adj_recovered [N, N], (node_emb [N, H1], neighbor_emb [N, H1]))
    """
    n, f_in = x.shape
    h1 = params["w_gc1"].shape[1]
    f32 = jnp.float32
    cdt = jnp.bfloat16 if use_bf16 else jnp.float32

    h1_pad = _round_up(h1, 128)

    # Zero-padded weights (padding contributes exactly zero to all contractions).
    w_gc1_p = _pad2(params["w_gc1"], f_in, h1_pad, f32)
    # Concatenated [W_node | W_nb] -> one 2*h1_pad-wide MXU pass in the epilogue.
    w_nw = jnp.zeros((h1_pad, 2 * h1_pad), f32)
    w_nw = (w_nw.at[:h1, :h1].set(params["w_node_t"])
                 .at[:h1, h1_pad:h1_pad + h1].set(params["w_nb_t"]))
    b_nw = jnp.zeros((1, 2 * h1_pad), f32)
    b_nw = (b_nw.at[:, :h1].set(params["b_node"])
                .at[:, h1_pad:h1_pad + h1].set(params["b_nb"]))

    small = (not force_tiled) and (n <= small_n_threshold)

    if small:
        # -------- single fully fused launch: everything resident in VMEM --------
        n_pad = _round_up(n, 8)
        x_p = _pad2(x, n_pad, f_in, cdt)
        adj_p = _pad2(adj_norm, n_pad, n_pad, cdt)

        kern = functools.partial(_fused_small_kernel, compute_dtype=cdt, h1_pad=h1_pad)
        adj_rec_p, node_p, nb_p = pl.pallas_call(
            kern,
            out_shape=(jax.ShapeDtypeStruct((n_pad, n_pad), f32),
                       jax.ShapeDtypeStruct((n_pad, h1_pad), f32),
                       jax.ShapeDtypeStruct((n_pad, h1_pad), f32)),
            grid=(1,),
            in_specs=[pl.BlockSpec((n_pad, f_in), lambda i: (0, 0)),
                      pl.BlockSpec((n_pad, n_pad), lambda i: (0, 0)),
                      pl.BlockSpec((f_in, h1_pad), lambda i: (0, 0)),
                      pl.BlockSpec((h1_pad, 2 * h1_pad), lambda i: (0, 0)),
                      pl.BlockSpec((1, 2 * h1_pad), lambda i: (0, 0))],
            out_specs=(pl.BlockSpec((n_pad, n_pad), lambda i: (0, 0)),
                       pl.BlockSpec((n_pad, h1_pad), lambda i: (0, 0)),
                       pl.BlockSpec((n_pad, h1_pad), lambda i: (0, 0))),
            compiler_params=pltpu.CompilerParams(
                dimension_semantics=("arbitrary",),
                vmem_limit_bytes=_VMEM_LIMIT_BYTES),
        )(x_p, adj_p, w_gc1_p, w_nw, b_nw)
    else:
        # -------- tiled two-pass path for large N --------
        if tile is None:
            # Largest MXU-aligned tile that still leaves >= 2 parallel row steps
            # (keeps both v7x TensorCores busy).
            tile = 128
            for cand in (512, 256):
                if _round_up(n, cand) // cand >= 2:
                    tile = cand
                    break
        n_pad = _round_up(n, tile)
        num_row = n_pad // tile

        x_p = _pad2(x, n_pad, f_in, cdt)
        adj_p = _pad2(adj_norm, n_pad, n_pad, cdt)   # bf16 halves the dominant N^2 stream

        # ---- pass 2: node / neighbor embeddings (K-reduction over adj columns) ----
        embed = functools.partial(_embed_kernel, compute_dtype=cdt, h1_pad=h1_pad)
        node_p, nb_p = pl.pallas_call(
            embed,
            out_shape=(jax.ShapeDtypeStruct((n_pad, h1_pad), f32),
                       jax.ShapeDtypeStruct((n_pad, h1_pad), f32)),
            grid=(num_row, num_row),
            in_specs=[pl.BlockSpec((tile, tile), lambda i, k: (i, k)),          # adj
                      pl.BlockSpec((tile, f_in), lambda i, k: (k, 0)),          # x
                      pl.BlockSpec((f_in, h1_pad), lambda i, k: (0, 0)),        # W_gc1 (resident)
                      pl.BlockSpec((h1_pad, 2 * h1_pad), lambda i, k: (0, 0)),  # [W_node|W_nb]
                      pl.BlockSpec((1, 2 * h1_pad), lambda i, k: (0, 0))],      # [b_node|b_nb]
            out_specs=(pl.BlockSpec((tile, h1_pad), lambda i, k: (i, 0)),
                       pl.BlockSpec((tile, h1_pad), lambda i, k: (i, 0))),
            scratch_shapes=[pltpu.VMEM((tile, h1_pad), f32)],
            compiler_params=pltpu.CompilerParams(
                dimension_semantics=("parallel", "arbitrary"),
                vmem_limit_bytes=_VMEM_LIMIT_BYTES),
        )(adj_p, x_p, w_gc1_p, w_nw, b_nw)

        # ---- pass 3: adj_rec = node @ nb^T (2-D tiled, both axes parallel) ----
        adj_rec_k = functools.partial(_adj_rec_kernel, compute_dtype=cdt)
        adj_rec_p = pl.pallas_call(
            adj_rec_k,
            out_shape=jax.ShapeDtypeStruct((n_pad, n_pad), f32),
            grid=(num_row, num_row),
            in_specs=[pl.BlockSpec((tile, h1_pad), lambda i, j: (i, 0)),
                      pl.BlockSpec((tile, h1_pad), lambda i, j: (j, 0))],
            out_specs=pl.BlockSpec((tile, tile), lambda i, j: (i, j)),
            compiler_params=pltpu.CompilerParams(
                dimension_semantics=("parallel", "parallel"),
                vmem_limit_bytes=_VMEM_LIMIT_BYTES),
        )(node_p, nb_p)

    if n_pad == n and h1_pad == h1:
        return adj_rec_p, (node_p, nb_p)
    return adj_rec_p[:n, :n], (node_p[:n, :h1], nb_p[:n, :h1])


def init_params(key, input_feat_dim, hidden_dim1):
    """Deterministic synthetic init mirroring the module's parameter shapes."""
    k1, k2, k3, k4, k5 = jax.random.split(key, 5)
    # GraphConvolution weight: [in, out], glorot-style scale.
    w_gc1 = jax.random.normal(k1, (input_feat_dim, hidden_dim1), jnp.float32) * (
        (2.0 / (input_feat_dim + hidden_dim1)) ** 0.5)
    # nn.Linear weights are [out, in] in torch; store transposed [in, out] here.
    w_node_t = jax.random.normal(k2, (hidden_dim1, hidden_dim1), jnp.float32) * (
        1.0 / (hidden_dim1 ** 0.5))
    b_node = jax.random.normal(k3, (1, hidden_dim1), jnp.float32) * 0.01
    w_nb_t = jax.random.normal(k4, (hidden_dim1, hidden_dim1), jnp.float32) * (
        1.0 / (hidden_dim1 ** 0.5))
    b_nb = jax.random.normal(k5, (1, hidden_dim1), jnp.float32) * 0.01
    return dict(w_gc1=w_gc1, w_node_t=w_node_t, b_node=b_node,
                w_nb_t=w_nb_t, b_nb=b_nb)


def reference_forward(x, adj_norm, params):
    support = x @ params["w_gc1"]
    h1 = jnp.maximum(adj_norm @ support, 0.0)
    node = h1 @ params["w_node_t"] + params["b_node"]
    nb = h1 @ params["w_nb_t"] + params["b_nb"]
    return node @ nb.T, (node, nb)


def _check(out, ref, atol, rtol):
    adj_rec, (node_emb, nb_emb) = out
    ref_adj, (ref_node, ref_nb) = ref
    assert jnp.allclose(adj_rec, ref_adj, atol=atol, rtol=rtol)
    assert jnp.allclose(node_emb, ref_node, atol=atol, rtol=rtol)
    assert jnp.allclose(nb_emb, ref_nb, atol=atol, rtol=rtol)


if __name__ == "__main__":
    # Small, forward-consistent shapes: N nodes, small feature dim, hidden_dim1.
    N, INPUT_FEAT_DIM, HIDDEN_DIM1 = 16, 8, 32
    # hidden_dim2 / dropout are unused in this module's forward (eval mode).

    key = jax.random.PRNGKey(0)
    kx, ka, kp = jax.random.split(key, 3)

    x = jax.random.normal(kx, (N, INPUT_FEAT_DIM), jnp.float32)
    # Symmetric, row-normalized adjacency (dense; torch.spmm semantics == dense mm here).
    a = jax.random.uniform(ka, (N, N), jnp.float32)
    a = (a + a.T) * 0.5 + jnp.eye(N, dtype=jnp.float32)
    adj_norm = a / jnp.sum(a, axis=1, keepdims=True)

    params = init_params(kp, INPUT_FEAT_DIM, HIDDEN_DIM1)
    ref = reference_forward(x, adj_norm, params)

    # 1) Default path: single fused launch, bf16 MXU inputs / f32 accumulation.
    out = gcn_modified_ae2_forward(x, adj_norm, params)
    jax.block_until_ready(out)
    _check(out, ref, atol=5e-2, rtol=5e-2)

    # 2) Fused path, strict f32 validation mode.
    out = gcn_modified_ae2_forward(x, adj_norm, params, use_bf16=False)
    jax.block_until_ready(out)
    _check(out, ref, atol=1e-4, rtol=1e-4)

    # 3) Large-N tiled path exercised on the small input (bf16).
    out = gcn_modified_ae2_forward(x, adj_norm, params, force_tiled=True)
    jax.block_until_ready(out)
    _check(out, ref, atol=5e-2, rtol=5e-2)

    # 4) Large-N tiled path, strict f32.
    out = gcn_modified_ae2_forward(x, adj_norm, params, force_tiled=True, use_bf16=False)
    jax.block_until_ready(out)
    _check(out, ref, atol=1e-4, rtol=1e-4)

    print("KERNEL_OK")
</pallas_src>

<mosaic_0001>
module attributes {stable_mosaic.version = 11 : i64} {
  func.func @_fused_small_kernel(%arg0: i32, %arg1: memref<16x8xbf16, #tpu.memory_space<vmem>>, %arg2: memref<16x16xbf16, #tpu.memory_space<vmem>>, %arg3: memref<8x128xf32, #tpu.memory_space<vmem>>, %arg4: memref<128x256xf32, #tpu.memory_space<vmem>>, %arg5: memref<1x256xf32, #tpu.memory_space<vmem>>, %arg6: memref<16x16xf32, #tpu.memory_space<vmem>>, %arg7: memref<16x128xf32, #tpu.memory_space<vmem>>, %arg8: memref<16x128xf32, #tpu.memory_space<vmem>>) attributes {dimension_semantics = [#tpu.dimension_semantics<arbitrary>], iteration_bounds = array<i64: 1>, scalar_prefetch = 0 : i64, scratch_operands = 0 : i64, tpu.core_type = #tpu.core_type<tc>, window_params = [{pipeline_mode = #tpu.pipeline_mode<synchronous>, transform_indices = @transform_0, window_bounds = array<i64: 16, 8>}, {pipeline_mode = #tpu.pipeline_mode<synchronous>, transform_indices = @transform_1, window_bounds = array<i64: 16, 16>}, {pipeline_mode = #tpu.pipeline_mode<synchronous>, transform_indices = @transform_2, window_bounds = array<i64: 8, 128>}, {pipeline_mode = #tpu.pipeline_mode<synchronous>, transform_indices = @transform_3, window_bounds = array<i64: 128, 256>}, {pipeline_mode = #tpu.pipeline_mode<synchronous>, transform_indices = @transform_4, window_bounds = array<i64: 1, 256>}, {pipeline_mode = #tpu.pipeline_mode<synchronous>, transform_indices = @transform_5, window_bounds = array<i64: 16, 16>}, {pipeline_mode = #tpu.pipeline_mode<synchronous>, transform_indices = @transform_6, window_bounds = array<i64: 16, 128>}, {pipeline_mode = #tpu.pipeline_mode<synchronous>, transform_indices = @transform_7, window_bounds = array<i64: 16, 128>}]} {
    %c0 = arith.constant 0 : index
    %c0_0 = arith.constant 0 : index
    %0 = vector.load %arg1[%c0, %c0_0] : memref<16x8xbf16, #tpu.memory_space<vmem>>, vector<16x8xbf16>
    %c0_1 = arith.constant 0 : index
    %c0_2 = arith.constant 0 : index
    %1 = vector.load %arg3[%c0_1, %c0_2] : memref<8x128xf32, #tpu.memory_space<vmem>>, vector<8x128xf32>
    %2 = arith.truncf %1 : vector<8x128xf32> to vector<8x128xbf16>
    %cst = arith.constant dense<0.000000e+00> : vector<16x128xf32>
    %3 = tpu.matmul %0, %2, %cst {dimension_numbers = #tpu.dot_dimension_numbers<[1], [0], [0], [1], [0, 0, 1, 1], [], []>} : vector<16x8xbf16>, vector<8x128xbf16>, vector<16x128xf32> -> vector<16x128xf32>
    %c0_3 = arith.constant 0 : index
    %c0_4 = arith.constant 0 : index
    %4 = vector.load %arg2[%c0_3, %c0_4] : memref<16x16xbf16, #tpu.memory_space<vmem>>, vector<16x16xbf16>
    %5 = arith.truncf %3 : vector<16x128xf32> to vector<16x128xbf16>
    %cst_5 = arith.constant dense<0.000000e+00> : vector<16x128xf32>
    %6 = tpu.matmul %4, %5, %cst_5 {dimension_numbers = #tpu.dot_dimension_numbers<[1], [0], [0], [1], [0, 0, 1, 1], [], []>} : vector<16x16xbf16>, vector<16x128xbf16>, vector<16x128xf32> -> vector<16x128xf32>
    %cst_6 = arith.constant 0.000000e+00 : f32
    %7 = vector.broadcast %cst_6 : f32 to vector<16x128xf32>
    %8 = arith.maximumf %6, %7 : vector<16x128xf32>
    %9 = arith.truncf %8 : vector<16x128xf32> to vector<16x128xbf16>
    %c0_7 = arith.constant 0 : index
    %c0_8 = arith.constant 0 : index
    %10 = vector.load %arg4[%c0_7, %c0_8] : memref<128x256xf32, #tpu.memory_space<vmem>>, vector<128x256xf32>
    %11 = arith.truncf %10 : vector<128x256xf32> to vector<128x256xbf16>
    %cst_9 = arith.constant dense<0.000000e+00> : vector<16x256xf32>
    %12 = tpu.matmul %9, %11, %cst_9 {dimension_numbers = #tpu.dot_dimension_numbers<[1], [0], [0], [1], [0, 0, 1, 1], [], []>} : vector<16x128xbf16>, vector<128x256xbf16>, vector<16x256xf32> -> vector<16x256xf32>
    %c0_10 = arith.constant 0 : index
    %c0_11 = arith.constant 0 : index
    %13 = vector.load %arg5[%c0_10, %c0_11] : memref<1x256xf32, #tpu.memory_space<vmem>>, vector<1x256xf32>
    %14 = vector.broadcast %13 : vector<1x256xf32> to vector<16x256xf32>
    %15 = arith.addf %12, %14 : vector<16x256xf32>
    %16 = vector.extract_strided_slice %15 {offsets = [0, 0], sizes = [16, 128], strides = [1, 1]} : vector<16x256xf32> to vector<16x128xf32>
    %17 = vector.extract_strided_slice %15 {offsets = [0, 128], sizes = [16, 128], strides = [1, 1]} : vector<16x256xf32> to vector<16x128xf32>
    %c0_12 = arith.constant 0 : index
    %c0_13 = arith.constant 0 : index
    %18 = vector.load %arg7[%c0_12, %c0_13] : memref<16x128xf32, #tpu.memory_space<vmem>>, vector<16x128xf32>
    tpu.vector_store %arg7[%c0_12, %c0_13], %16 {strides = array<i32>} : memref<16x128xf32, #tpu.memory_space<vmem>>, vector<16x128xf32>,
    %c0_14 = arith.constant 0 : index
    %c0_15 = arith.constant 0 : index
    %19 = vector.load %arg8[%c0_14, %c0_15] : memref<16x128xf32, #tpu.memory_space<vmem>>, vector<16x128xf32>
    tpu.vector_store %arg8[%c0_14, %c0_15], %17 {strides = array<i32>} : memref<16x128xf32, #tpu.memory_space<vmem>>, vector<16x128xf32>,
    %20 = arith.truncf %16 : vector<16x128xf32> to vector<16x128xbf16>
    %21 = arith.truncf %17 : vector<16x128xf32> to vector<16x128xbf16>
    %cst_16 = arith.constant dense<0.000000e+00> : vector<16x16xf32>
    %22 = tpu.matmul %20, %21, %cst_16 {dimension_numbers = #tpu.dot_dimension_numbers<[1], [1], [0], [0], [0, 0, 1, 0], [], []>} : vector<16x128xbf16>, vector<16x128xbf16>, vector<16x16xf32> -> vector<16x16xf32>
    %c0_17 = arith.constant 0 : index
    %c0_18 = arith.constant 0 : index
    %23 = vector.load %arg6[%c0_17, %c0_18] : memref<16x16xf32, #tpu.memory_space<vmem>>, vector<16x16xf32>
    tpu.vector_store %arg6[%c0_17, %c0_18], %22 {strides = array<i32>} : memref<16x16xf32, #tpu.memory_space<vmem>>, vector<16x16xf32>,
    return
  }
  func.func @transform_0(%arg0: i32) -> (i32, i32) {
    %c0_i32 = arith.constant 0 : i32
    %c0_i32_0 = arith.constant 0 : i32
    %c0_i32_1 = arith.constant 0 : i32
    return %c0_i32, %c0_i32_0 : i32, i32
  }
  func.func @transform_1(%arg0: i32) -> (i32, i32) {
    %c0_i32 = arith.constant 0 : i32
    %c0_i32_0 = arith.constant 0 : i32
    %c0_i32_1 = arith.constant 0 : i32
    return %c0_i32, %c0_i32_0 : i32, i32
  }
  func.func @transform_2(%arg0: i32) -> (i32, i32) {
    %c0_i32 = arith.constant 0 : i32
    %c0_i32_0 = arith.constant 0 : i32
    %c0_i32_1 = arith.constant 0 : i32
    return %c0_i32, %c0_i32_0 : i32, i32
  }
  func.func @transform_3(%arg0: i32) -> (i32, i32) {
    %c0_i32 = arith.constant 0 : i32
    %c0_i32_0 = arith.constant 0 : i32
    %c0_i32_1 = arith.constant 0 : i32
    return %c0_i32, %c0_i32_0 : i32, i32
  }
  func.func @transform_4(%arg0: i32) -> (i32, i32) {
    %c0_i32 = arith.constant 0 : i32
    %c0_i32_0 = arith.constant 0 : i32
    %c0_i32_1 = arith.constant 0 : i32
    return %c0_i32, %c0_i32_0 : i32, i32
  }
  func.func @transform_5(%arg0: i32) -> (i32, i32) {
    %c0_i32 = arith.constant 0 : i32
    %c0_i32_0 = arith.constant 0 : i32
    %c0_i32_1 = arith.constant 0 : i32
    return %c0_i32, %c0_i32_0 : i32, i32
  }
  func.func @transform_6(%arg0: i32) -> (i32, i32) {
    %c0_i32 = arith.constant 0 : i32
    %c0_i32_0 = arith.constant 0 : i32
    %c0_i32_1 = arith.constant 0 : i32
    return %c0_i32, %c0_i32_0 : i32, i32
  }
  func.func @transform_7(%arg0: i32) -> (i32, i32) {
    %c0_i32 = arith.constant 0 : i32
    %c0_i32_0 = arith.constant 0 : i32
    %c0_i32_1 = arith.constant 0 : i32
    return %c0_i32, %c0_i32_0 : i32, i32
  }
}

</mosaic_0001>

<llo_original>
// kernel: tpu_custom_call.1
$region0: #{tpu_custom_call.1}
  #allocation0 [shape = 'u32[]', space=smem, size = 0x4, offset = 0x4, fixed_abs, tag = 'smem constant byte address 0x4 - core index']
  #allocation1 [shape = 'u32[144,128]{1,0:T(1,128)}', space=vmem, size = 0x12000, scoped, tag = 'internal scratch']
  %s0 = inlined_call_operand.vmem [shape: bf16[16,8], index: 0, kind: input, shape index: {}]
  %s1 = inlined_call_operand.vmem [shape: bf16[16,16], index: 1, kind: input, shape index: {}]
  %s2 = inlined_call_operand.vmem [shape: f32[8,128], index: 2, kind: input, shape index: {}]
  %s3 = inlined_call_operand.hbm [shape: f32[128,256], index: 3, kind: input, shape index: {}]
  %s4 = inlined_call_operand.vmem [shape: f32[1,256], index: 4, kind: input, shape index: {}]
  %s5 = inlined_call_operand.hbm [shape: f32[16,16], index: 5, kind: output, shape index: {0}]
  %s6 = inlined_call_operand.hbm [shape: f32[16,128], index: 6, kind: output, shape index: {1}]
  %s7 = inlined_call_operand.hbm [shape: f32[16,128], index: 7, kind: output, shape index: {2}]
  %8 = xla_tuple %s5, %s6, %s7
  %s9 = sld [smem:[#allocation0]]
  $region50: #{tpu_custom_call.1} parent=0
    _
  %s11 = ssub.s32 1, %s9
  %s12 = scalar_select 0, %s11, %s9
  $region1: #{tpu_custom_call.1} parent=0
    #allocation2 [shape = 'u8[131072]{0}', space=vmem, size = 0x20000, scoped, tag = 'input window, operand 3, single buffered']
    #allocation3 [shape = 's32[1]{0}', space=sflag, size = 0x4, scoped, tag = 'scoped memory for tpu_custom_call.1']
    #allocation4 [shape = 's32[1]{0}', space=sflag, size = 0x4, scoped, tag = 'scoped memory for tpu_custom_call.1']
    #allocation5 [shape = 'u8[8192]{0}', space=vmem, size = 0x2000, scoped, tag = 'output window, operand 0, single buffered']
    #allocation6 [shape = 'u8[8192]{0}', space=vmem, size = 0x2000, scoped, tag = 'output window, operand 1, single buffered']
    #allocation7 [shape = 's32[1]{0}', space=sflag, size = 0x4, scoped, tag = 'scoped memory for tpu_custom_call.1']
    #allocation8 [shape = 'u8[8192]{0}', space=vmem, size = 0x2000, scoped, tag = 'output window, operand 2, single buffered']
    %13 = vsyncpa [#allocation3], 0
    %14 = vsyncpa [#allocation4], 0
    %15 = vsyncpa [#allocation7], 0
    // Predicated region
    $region2: #{tpu_custom_call.1} parent=1 // pred_check
      _
    $region3: #{tpu_custom_call.1} parent=1 // pred_check_branch
      %17 = sbr.rel (0) target = $region5
    $region4: #{tpu_custom_call.1} parent=1 // pred_region
      _
    $region5: #{tpu_custom_call.1} parent=1 // pred_fallthru
      _
    // Predicated region
    $region6: #{tpu_custom_call.1} parent=1 // pred_check
      _
    $region7: #{tpu_custom_call.1} parent=1 // pred_check_branch
      %19 = sbr.rel (0) target = $region9
    $region8: #{tpu_custom_call.1} parent=1 // pred_region
      _
    $region9: #{tpu_custom_call.1} parent=1 // pred_fallthru
      _
    // Predicated region
    $region10: #{tpu_custom_call.1} parent=1 // pred_check
      _
    $region11: #{tpu_custom_call.1} parent=1 // pred_check_branch
      %21 = sbr.rel (0) target = $region13
    $region12: #{tpu_custom_call.1} parent=1 // pred_region
      _
    $region13: #{tpu_custom_call.1} parent=1 // pred_fallthru
      _
    // Predicated region
    $region14: #{tpu_custom_call.1} parent=1 // pred_check
      _
    $region15: #{tpu_custom_call.1} parent=1 // pred_check_branch
      %23 = sbr.rel (0) target = $region17
    $region16: #{tpu_custom_call.1} parent=1 // pred_region
      %s25 = ssub.s32 4096, 4096
      %26 = vsyncadd [#allocation3], %s25
      %s27 = sshll.u32 [#allocation2], 4
      %s28 = int_to_ptr.vmem [resolvable:$true] %s27
      %33 = dma.hbm_to_vmem [thread:$0]  %s3, 4096, %s28, [#allocation3], 256, 256, 16
    $region17: #{tpu_custom_call.1} parent=1 // pred_fallthru
      _
    // Predicated region
    $region18: #{tpu_custom_call.1} parent=1 // pred_check
      _
    $region19: #{tpu_custom_call.1} parent=1 // pred_check_branch
      %35 = sbr.rel (0) target = $region21
    $region20: #{tpu_custom_call.1} parent=1 // pred_region
      _
    $region21: #{tpu_custom_call.1} parent=1 // pred_fallthru
      _
    // Predicated region
    $region22: #{tpu_custom_call.1} parent=1 // pred_check
      _
    $region23: #{tpu_custom_call.1} parent=1 // pred_check_branch
      %37 = sbr.rel (0) target = $region25
    $region24: #{tpu_custom_call.1} parent=1 // pred_region
      %38 = dma.done [#allocation3], 4096
    $region25: #{tpu_custom_call.1} parent=1 // pred_fallthru
      _
    %v40 = vld [vmem:[%s0] sm:$0xf]
    %v41 = vld [vmem:[%s0 + $0x4] sm:$0xf]
    %v42 = vld [vmem:[%s2] sm:$0xff]
    %v43 = vpack.c.bf16 %v42, %v42
    %v46 = vunpack.c.l.b16 %v40
    %v47 = vunpack.c.l.b16 %v41
    %v48 = vpack.c.b16 %v47, %v46
    %vm49 = vcmask 64512
    %v51 = vsel %vm49, %v48, 0
    %vm53 = vcmask 1043456
    %v55 = vsel %vm53, %v43, 0
    %57 = vmatprep.subr.bf16.mxu0 0
    %58 = vmatpush1.bf16.msra.mxu0 %v55
    %59 = vmatprep.subr.bf16.mxu0 0
    %60 = vmatpush1.bf16.msra.mxu0 0
    %61 = vmatprep.subr.bf16.mxu0 0
    %62 = vmatpush1.bf16.msra.mxu0 0
    %63 = vmatprep.subr.bf16.mxu0 0
    %64 = vmatpush1.bf16.msra.mxu0 0
    %65 = vmatprep.subr.bf16.mxu0 0
    %66 = vmatpush1.bf16.msra.mxu0 0
    %67 = vmatprep.subr.bf16.mxu0 0
    %68 = vmatpush1.bf16.msra.mxu0 0
    %69 = vmatprep.subr.bf16.mxu0 0
    %70 = vmatpush1.bf16.msra.mxu0 0
    %71 = vmatprep.subr.bf16.mxu0 0
    %72 = vmatpush1.bf16.msra.mxu0 0
    %73 = vmatprep.subr.bf16.mxu0 0
    %74 = vmatpush1.bf16.msra.mxu0 0
    %75 = vmatprep.subr.bf16.mxu0 0
    %76 = vmatpush1.bf16.msra.mxu0 0
    %77 = vmatprep.subr.bf16.mxu0 0
    %78 = vmatpush1.bf16.msra.mxu0 0
    %79 = vmatprep.subr.bf16.mxu0 0
    %80 = vmatpush1.bf16.msra.mxu0 0
    %81 = vmatprep.subr.bf16.mxu0 0
    %82 = vmatpush1.bf16.msra.mxu0 0
    %83 = vmatprep.subr.bf16.mxu0 0
    %84 = vmatpush1.bf16.msra.mxu0 0
    %85 = vmatprep.subr.bf16.mxu0 0
    %86 = vmatpush1.bf16.msra.mxu0 0
    %87 = vmatprep.subr.bf16.mxu0 0
    %88 = vmatpush1.bf16.msra.mxu0 0
    %89 = vmatprep.mubr.bf16.mxu0 0
    %90 = vmatmul.mubr.bf16.gmra.mrb[0].mxu0 %v51
    %v91 = vpop.f32.mrb[0].mxu0
    %v92 = vadd.f32 0.0, %v91
    %v93 = vpop.f32.mrb[0].mxu0
    %v94 = vpop.f32.mrb[0].mxu0
    %v95 = vadd.f32 0.0, %v94
    %v96 = vpop.f32.mrb[0].mxu0
    %97 = vdwg.mxu0
    %v98 = vld [vmem:[%s1] sm:$0xf]
    %v99 = vld [vmem:[%s1 + $0x4] sm:$0xf]
    %v100 = vpack.c.bf16 %v95, %v92
    %v103 = vunpack.c.l.b16 %v98
    %v104 = vunpack.c.l.b16 %v99
    %v105 = vpack.c.b16 %v104, %v103
    %vm106 = vcmask 130048
    %v108 = vsel %vm106, %v105, 0
    %110 = vmatprep.subr.bf16.mxu0 0
    %111 = vmatpush1.bf16.msra.mxu0 %v100
    %112 = vmatprep.subr.bf16.mxu0 0
    %113 = vmatpush1.bf16.msra.mxu0 0
    %114 = vmatprep.subr.bf16.mxu0 0
    %115 = vmatpush1.bf16.msra.mxu0 0
    %116 = vmatprep.subr.bf16.mxu0 0
    %117 = vmatpush1.bf16.msra.mxu0 0
    %118 = vmatprep.subr.bf16.mxu0 0
    %119 = vmatpush1.bf16.msra.mxu0 0
    %120 = vmatprep.subr.bf16.mxu0 0
    %121 = vmatpush1.bf16.msra.mxu0 0
    %122 = vmatprep.subr.bf16.mxu0 0
    %123 = vmatpush1.bf16.msra.mxu0 0
    %124 = vmatprep.subr.bf16.mxu0 0
    %125 = vmatpush1.bf16.msra.mxu0 0
    %126 = vmatprep.subr.bf16.mxu0 0
    %127 = vmatpush1.bf16.msra.mxu0 0
    %128 = vmatprep.subr.bf16.mxu0 0
    %129 = vmatpush1.bf16.msra.mxu0 0
    %130 = vmatprep.subr.bf16.mxu0 0
    %131 = vmatpush1.bf16.msra.mxu0 0
    %132 = vmatprep.subr.bf16.mxu0 0
    %133 = vmatpush1.bf16.msra.mxu0 0
    %134 = vmatprep.subr.bf16.mxu0 0
    %135 = vmatpush1.bf16.msra.mxu0 0
    %136 = vmatprep.subr.bf16.mxu0 0
    %137 = vmatpush1.bf16.msra.mxu0 0
    %138 = vmatprep.subr.bf16.mxu0 0
    %139 = vmatpush1.bf16.msra.mxu0 0
    %140 = vmatprep.subr.bf16.mxu0 0
    %141 = vmatpush1.bf16.msra.mxu0 0
    %142 = vmatprep.mubr.bf16.mxu0 0
    %143 = vmatmul.mubr.bf16.gmra.mrb[0].mxu0 %v108
    %v144 = vpop.f32.mrb[0].mxu0
    %v145 = vadd.f32 0.0, %v144
    %v146 = vpop.f32.mrb[0].mxu0
    %v147 = vpop.f32.mrb[0].mxu0
    %v148 = vadd.f32 0.0, %v147
    %v149 = vpop.f32.mrb[0].mxu0
    %150 = vdwg.mxu0
    %v151 = vmax.f32 %v145, 0.0
    %v152 = vmax.f32 %v148, 0.0
    %v153 = vpack.c.bf16 %v152, %v151
    %v154 = vld [vmem:[#allocation2] sm:$0xff]
    %v155 = vld [vmem:[#allocation2 + $0x8] sm:$0xff]
    %v156 = vld [vmem:[#allocation2 + $0x10] sm:$0xff]
    %v157 = vld [vmem:[#allocation2 + $0x18] sm:$0xff]
    %v158 = vld [vmem:[#allocation2 + $0x20] sm:$0xff]
    %v159 = vld [vmem:[#allocation2 + $0x28] sm:$0xff]
    %v160 = vld [vmem:[#allocation2 + $0x30] sm:$0xff]
    %v161 = vld [vmem:[#allocation2 + $0x38] sm:$0xff]
    %v162 = vld [vmem:[#allocation2 + $0x40] sm:$0xff]
    %v163 = vld [vmem:[#allocation2 + $0x48] sm:$0xff]
    %v164 = vld [vmem:[#allocation2 + $0x50] sm:$0xff]
    %v165 = vld [vmem:[#allocation2 + $0x58] sm:$0xff]
    %v166 = vld [vmem:[#allocation2 + $0x60] sm:$0xff]
    %v167 = vld [vmem:[#allocation2 + $0x68] sm:$0xff]
    %v168 = vld [vmem:[#allocation2 + $0x70] sm:$0xff]
    %v169 = vld [vmem:[#allocation2 + $0x78] sm:$0xff]
    %v170 = vld [vmem:[#allocation2 + $0x80] sm:$0xff]
    %v171 = vld [vmem:[#allocation2 + $0x88] sm:$0xff]
    %v172 = vld [vmem:[#allocation2 + $0x90] sm:$0xff]
    %v173 = vld [vmem:[#allocation2 + $0x98] sm:$0xff]
    %v174 = vld [vmem:[#allocation2 + $0xa0] sm:$0xff]
    %v175 = vld [vmem:[#allocation2 + $0xa8] sm:$0xff]
    %v176 = vld [vmem:[#allocation2 + $0xb0] sm:$0xff]
    %v177 = vld [vmem:[#allocation2 + $0xb8] sm:$0xff]
    %v178 = vld [vmem:[#allocation2 + $0xc0] sm:$0xff]
    %v179 = vld [vmem:[#allocation2 + $0xc8] sm:$0xff]
    %v180 = vld [vmem:[#allocation2 + $0xd0] sm:$0xff]
    %v181 = vld [vmem:[#allocation2 + $0xd8] sm:$0xff]
    %v182 = vld [vmem:[#allocation2 + $0xe0] sm:$0xff]
    %v183 = vld [vmem:[#allocation2 + $0xe8] sm:$0xff]
    %v184 = vld [vmem:[#allocation2 + $0xf0] sm:$0xff]
    %v185 = vld [vmem:[#allocation2 + $0xf8] sm:$0xff]
    %v186 = vpack.c.bf16 %v156, %v154
    %v187 = vpack.c.bf16 %v157, %v155
    %v188 = vpack.c.bf16 %v160, %v158
    %v189 = vpack.c.bf16 %v161, %v159
    %v190 = vpack.c.bf16 %v164, %v162
    %v191 = vpack.c.bf16 %v165, %v163
    %v192 = vpack.c.bf16 %v168, %v166
    %v193 = vpack.c.bf16 %v169, %v167
    %v194 = vpack.c.bf16 %v172, %v170
    %v195 = vpack.c.bf16 %v173, %v171
    %v196 = vpack.c.bf16 %v176, %v174
    %v197 = vpack.c.bf16 %v177, %v175
    %v198 = vpack.c.bf16 %v180, %v178
    %v199 = vpack.c.bf16 %v181, %v179
    %v200 = vpack.c.bf16 %v184, %v182
    %v201 = vpack.c.bf16 %v185, %v183
    %v202 = vld [vmem:[%s4] sm:$0x3]
    %v204 = vlaneseq
    %v205 = vshrl.u32 %v204, 7
    %v206 = vsub.s32 0, %v205
    %v207 = vrot.slane %v202, %v206
    %v208 = vlaneseq
    %v209 = vshrl.u32 %v208, 7
    %v210 = vsub.s32 1, %v209
    %v211 = vrot.slane %v202, %v210
    %214 = vmatprep.subr.bf16.mxu0 %v187
    %215 = vmatpush1.bf16.msra.mxu0 %v186
    %216 = vmatprep.subr.bf16.mxu0 %v189
    %217 = vmatpush1.bf16.msra.mxu0 %v188
    %218 = vmatprep.subr.bf16.mxu0 %v191
    %219 = vmatpush1.bf16.msra.mxu0 %v190
    %220 = vmatprep.subr.bf16.mxu0 %v193
    %221 = vmatpush1.bf16.msra.mxu0 %v192
    %222 = vmatprep.subr.bf16.mxu0 %v195
    %223 = vmatpush1.bf16.msra.mxu0 %v194
    %224 = vmatprep.subr.bf16.mxu0 %v197
    %225 = vmatpush1.bf16.msra.mxu0 %v196
    %226 = vmatprep.subr.bf16.mxu0 %v199
    %227 = vmatpush1.bf16.msra.mxu0 %v198
    %228 = vmatprep.subr.bf16.mxu0 %v201
    %229 = vmatpush1.bf16.msra.mxu0 %v200
    %230 = vmatprep.subr.bf16.mxu0 0
    %231 = vmatpush1.bf16.msra.mxu0 0
    %232 = vmatprep.subr.bf16.mxu0 0
    %233 = vmatpush1.bf16.msra.mxu0 0
    %234 = vmatprep.subr.bf16.mxu0 0
    %235 = vmatpush1.bf16.msra.mxu0 0
    %236 = vmatprep.subr.bf16.mxu0 0
    %237 = vmatpush1.bf16.msra.mxu0 0
    %238 = vmatprep.subr.bf16.mxu0 0
    %239 = vmatpush1.bf16.msra.mxu0 0
    %240 = vmatprep.subr.bf16.mxu0 0
    %241 = vmatpush1.bf16.msra.mxu0 0
    %242 = vmatprep.subr.bf16.mxu0 0
    %243 = vmatpush1.bf16.msra.mxu0 0
    %244 = vmatprep.subr.bf16.mxu0 0
    %245 = vmatpush1.bf16.msra.mxu0 0
    %246 = vmatprep.mubr.bf16.mxu0 0
    %247 = vmatmul.mubr.bf16.gmra.mrb[0].mxu0 %v153
    %v248 = vpop.f32.mrb[0].mxu0
    %v249 = vadd.f32 %v207, %v248
    %v250 = vpop.f32.mrb[0].mxu0
    %v251 = vadd.f32 %v211, %v250
    %v252 = vpop.f32.mrb[0].mxu0
    %v253 = vadd.f32 %v207, %v252
    %v254 = vpop.f32.mrb[0].mxu0
    %v255 = vadd.f32 %v211, %v254
    %256 = vdwg.mxu0
    %257 = vst [vmem:[#allocation6] sm:$0xff] %v249
    %258 = vst [vmem:[#allocation6 + $0x8] sm:$0xff] %v253
    %259 = vst [vmem:[#allocation8] sm:$0xff] %v251
    %260 = vst [vmem:[#allocation8 + $0x8] sm:$0xff] %v255
    %v261 = vpack.c.bf16 %v253, %v249
    %v262 = vpack.c.bf16 %v255, %v251
    %263 = vmatprep.subr.bf16.mxu0 0
    %264 = vmatpush1.bf16.xpose.msra.mxu0 %v262
    %265 = vmatprep.subr.bf16.mxu0 0
    %266 = vmatpush1.bf16.xpose.msra.mxu0 0
    %267 = vmatprep.subr.bf16.mxu0 0
    %268 = vmatpush1.bf16.xpose.msra.mxu0 0
    %269 = vmatprep.subr.bf16.mxu0 0
    %270 = vmatpush1.bf16.xpose.msra.mxu0 0
    %271 = vmatprep.subr.bf16.mxu0 0
    %272 = vmatpush1.bf16.xpose.msra.mxu0 0
    %273 = vmatprep.subr.bf16.mxu0 0
    %274 = vmatpush1.bf16.xpose.msra.mxu0 0
    %275 = vmatprep.subr.bf16.mxu0 0
    %276 = vmatpush1.bf16.xpose.msra.mxu0 0
    %277 = vmatprep.subr.bf16.mxu0 0
    %278 = vmatpush1.bf16.xpose.msra.mxu0 0
    %279 = vmatprep.subr.bf16.mxu0 0
    %280 = vmatpush1.bf16.xpose.msra.mxu0 0
    %281 = vmatprep.subr.bf16.mxu0 0
    %282 = vmatpush1.bf16.xpose.msra.mxu0 0
    %283 = vmatprep.subr.bf16.mxu0 0
    %284 = vmatpush1.bf16.xpose.msra.mxu0 0
    %285 = vmatprep.subr.bf16.mxu0 0
    %286 = vmatpush1.bf16.xpose.msra.mxu0 0
    %287 = vmatprep.subr.bf16.mxu0 0
    %288 = vmatpush1.bf16.xpose.msra.mxu0 0
    %289 = vmatprep.subr.bf16.mxu0 0
    %290 = vmatpush1.bf16.xpose.msra.mxu0 0
    %291 = vmatprep.subr.bf16.mxu0 0
    %292 = vmatpush1.bf16.xpose.msra.mxu0 0
    %293 = vmatprep.subr.bf16.mxu0 0
    %294 = vmatpush1.bf16.xpose.msra.mxu0 0
    %295 = vmatprep.mubr.bf16.mxu0 0
    %296 = vmatmul.mubr.bf16.gmra.mrb[0].mxu0 %v261
    %v297 = vpop.f32.mrb[0].mxu0
    %v298 = vadd.f32 0.0, %v297
    %v299 = vpop.f32.mrb[0].mxu0
    %v300 = vpop.f32.mrb[0].mxu0
    %v301 = vadd.f32 0.0, %v300
    %v302 = vpop.f32.mrb[0].mxu0
    %303 = vdwg.mxu0
    %304 = vst.msk [vmem:[#allocation5] sm:$0xff] %vm106, %v298
    %305 = vst.msk [vmem:[#allocation5 + $0x8] sm:$0xff] %vm106, %v301
    // Predicated region
    $region26: #{tpu_custom_call.1} parent=1 // pred_check
      _
    $region27: #{tpu_custom_call.1} parent=1 // pred_check_branch
      %307 = sbr.rel (0) target = $region29
    $region28: #{tpu_custom_call.1} parent=1 // pred_region
      %s309 = ssub.s32 256, 256
      %310 = vsyncadd [#allocation4], %s309
      %s311 = sshll.u32 [#allocation5], 4
      %s312 = int_to_ptr.vmem [resolvable:$true] %s311
      %317 = dma.vmem_to_hbm [thread:$0]  %s312, 256, %s5, [#allocation4], 128, 128, 8
    $region29: #{tpu_custom_call.1} parent=1 // pred_fallthru
      _
    // Predicated region
    $region30: #{tpu_custom_call.1} parent=1 // pred_check
      _
    $region31: #{tpu_custom_call.1} parent=1 // pred_check_branch
      %319 = sbr.rel (0) target = $region33
    $region32: #{tpu_custom_call.1} parent=1 // pred_region
      %s321 = ssub.s32 256, 256
      %322 = vsyncadd [#allocation7], %s321
      %s323 = sshll.u32 [#allocation6], 4
      %s324 = int_to_ptr.vmem [resolvable:$true] %s323
      %329 = dma.vmem_to_hbm [thread:$0]  %s324, 256, %s6, [#allocation7], 128, 128, 8
    $region33: #{tpu_custom_call.1} parent=1 // pred_fallthru
      _
    // Predicated region
    $region34: #{tpu_custom_call.1} parent=1 // pred_check
      _
    $region35: #{tpu_custom_call.1} parent=1 // pred_check_branch
      %331 = sbr.rel (0) target = $region37
    $region36: #{tpu_custom_call.1} parent=1 // pred_region
      %s333 = ssub.s32 256, 256
      %334 = vsyncadd [#allocation7], %s333
      %s335 = sshll.u32 [#allocation8], 4
      %s336 = int_to_ptr.vmem [resolvable:$true] %s335
      %341 = dma.vmem_to_hbm [thread:$0]  %s336, 256, %s7, [#allocation7], 128, 128, 8
    $region37: #{tpu_custom_call.1} parent=1 // pred_fallthru
      _
    // Predicated region
    $region38: #{tpu_custom_call.1} parent=1 // pred_check
      _
    $region39: #{tpu_custom_call.1} parent=1 // pred_check_branch
      %343 = sbr.rel (0) target = $region41
    $region40: #{tpu_custom_call.1} parent=1 // pred_region
      %344 = dma.done [#allocation4], 256
    $region41: #{tpu_custom_call.1} parent=1 // pred_fallthru
      _
    // Predicated region
    $region42: #{tpu_custom_call.1} parent=1 // pred_check
      _
    $region43: #{tpu_custom_call.1} parent=1 // pred_check_branch
      %346 = sbr.rel (0) target = $region45
    $region44: #{tpu_custom_call.1} parent=1 // pred_region
      %347 = dma.done [#allocation7], 256
    $region45: #{tpu_custom_call.1} parent=1 // pred_fallthru
      _
    // Predicated region
    $region46: #{tpu_custom_call.1} parent=1 // pred_check
      _
    $region47: #{tpu_custom_call.1} parent=1 // pred_check_branch
      %349 = sbr.rel (0) target = $region49
    $region48: #{tpu_custom_call.1} parent=1 // pred_region
      %350 = dma.done [#allocation7], 256
    $region49: #{tpu_custom_call.1} parent=1 // pred_fallthru
      _
    %351 = vsyncpa [#allocation3], 1
    %352 = vsyncpa [#allocation4], 1
    %353 = vsyncpa [#allocation7], 1

</llo_original>
